<compile_context>
chip_gen: v6e
topology: v6e:2x2x1
jax: 0.10.0
libtpu: 0.0.40
codegen_flags: <defaults>
</compile_context>

<pallas_src>
import math

import jax
import jax.numpy as jnp
from jax.experimental import pallas as pl
from jax.experimental.pallas import tpu as pltpu

DEFAULT_BOUND = 0.01


def _spredictor2_kernel(x_ref, w_ref, b_ref, o_ref):
    # x_ref: (tm, K)  f32   stacked expansion_data rows
    # w_ref: (K, tn)  bf16  shared out-layer weight tile (upcast in vregs, not in HBM)
    # b_ref: (tm, tn) f32   fused (out_parameters + bias_bias) rows
    # o_ref: (tm, tn) f32
    w = w_ref[...].astype(jnp.float32)
    v = jnp.dot(x_ref[...], w, preferred_element_type=jnp.float32)   # MXU
    o_ref[...] = (v + b_ref[...]).astype(o_ref.dtype)


def _pick_tile(dim, candidates):
    """Largest candidate that evenly tiles `dim`, else the full dim (single block)."""
    for t in candidates:
        if dim >= t and dim % t == 0:
            return t
    return dim


def spredictor2_forward_batched(x, w, fused_bias):
    """Batched SPredictor2 forward (MultiMLP.get_results path).

    x:          (M, in_f)  f32  stacked expansion_data of M predictors
    w:          (in_f, out_f)   stored once in kernel layout (bf16 or f32)
    fused_bias: (M, out_f) f32  precomputed out_parameters + bias_bias
    returns     (M, out_f) f32
    """
    M, K = x.shape
    Kw, N = w.shape
    assert K == Kw and fused_bias.shape == (M, N)

    tm = _pick_tile(M, (256, 128, 8))
    tn = _pick_tile(N, (512, 256, 128))
    grid = (M // tm, N // tn)

    return pl.pallas_call(
        _spredictor2_kernel,
        out_shape=jax.ShapeDtypeStruct((M, N), jnp.float32),
        grid=grid,
        in_specs=[
            pl.BlockSpec((tm, K), lambda i, j: (i, 0)),   # X row-tile, full K
            pl.BlockSpec((K, tn), lambda i, j: (0, j)),   # W column-tile, full K
            pl.BlockSpec((tm, tn), lambda i, j: (i, j)),  # fused bias tile
        ],
        out_specs=pl.BlockSpec((tm, tn), lambda i, j: (i, j)),
        compiler_params=pltpu.CompilerParams(
            dimension_semantics=("parallel", "parallel")),
    )(x, w, fused_bias)


def spredictor2_forward(expansion_data, w, fused_bias):
    """Single-predictor forward matching SPredictor2.forward(); returns (out_f,).

    Fallback path only -- at M=1 the call is overhead-bound; prefer the batched entry point.
    """
    out = spredictor2_forward_batched(
        expansion_data.reshape(1, -1), w, fused_bias.reshape(1, -1))
    return out.reshape(-1)


def init_spredictor2_params(key, num_predictors, in_features, out_features,
                            weight_dtype=jnp.bfloat16):
    """Parameters for `num_predictors` SPredictor2 modules sharing one MultiMLP out layer
    (layers=0 path, so mid_features == in_features), built directly in kernel layout:

      w:          (in_features, out_features)  stored once, bf16 by default
      x:          (num_predictors, in_features) f32 stacked expansion_data
      fused_bias: (num_predictors, out_features) f32 = out_parameters + bias_bias

    In training, the fused bias would be re-folded whenever either parameter changes.
    """
    k_exp, k_w, k_ift = jax.random.split(key, 3)

    # expansion_data ~ U(-DEFAULT_BOUND, DEFAULT_BOUND), one row per predictor.
    x = jax.random.uniform(
        k_exp, (num_predictors, in_features),
        minval=-DEFAULT_BOUND, maxval=DEFAULT_BOUND, dtype=jnp.float32)

    # Linear(mid, out, bias=False) default init: kaiming_uniform(a=sqrt(5))
    # -> U(-1/sqrt(fan_in), 1/sqrt(fan_in)); stored transposed to (in_f, out_f) once.
    bound = 1.0 / math.sqrt(in_features)
    w = jax.random.uniform(
        k_w, (in_features, out_features),
        minval=-bound, maxval=bound, dtype=jnp.float32).astype(weight_dtype)

    # reset_parameters: v = out_layer(expansion_data); out_parameters = ift - v
    ift = jax.random.uniform(
        k_ift, (num_predictors, out_features),
        minval=-DEFAULT_BOUND, maxval=DEFAULT_BOUND, dtype=jnp.float32)
    v = x @ w.astype(jnp.float32)
    out_parameters = ift - v
    bias_bias = jnp.zeros((num_predictors, 1), dtype=jnp.float32)

    fused_bias = out_parameters + bias_bias   # folded once; not re-added per call
    return x, w, fused_bias


if __name__ == "__main__":
    # 8 predictors sharing one MultiMLP(layers=0) out layer -> MXU sees an (8,32)@(32,16)
    # with a sublane-full LHS instead of a 1-row matvec.
    num_predictors = 8
    in_features = 32       # == mid_features for the layers=0 MultiMLP path
    out_features = 16

    key = jax.random.PRNGKey(0)
    x, w, fused_bias = init_spredictor2_params(
        key, num_predictors, in_features, out_features)

    out = spredictor2_forward_batched(x, w, fused_bias)
    out = jax.block_until_ready(out)

    # Pure-JAX reference of the same batched forward pass.
    ref = x @ w.astype(jnp.float32) + fused_bias
    assert out.shape == (num_predictors, out_features)
    assert jnp.allclose(out, ref, atol=2e-5, rtol=1e-3)

    # Single-predictor path (exact SPredictor2.forward() semantics for one module).
    one = spredictor2_forward(x[0], w, fused_bias[0])
    one = jax.block_until_ready(one)
    assert one.shape == (out_features,)
    assert jnp.allclose(one, ref[0], atol=2e-5, rtol=1e-3)

    print("KERNEL_OK")
</pallas_src>

<mosaic_0001>
module attributes {stable_mosaic.version = 11 : i64} {
  func.func @_spredictor2_kernel(%arg0: i32, %arg1: i32, %arg2: memref<8x32xf32, #tpu.memory_space<vmem>>, %arg3: memref<32x16xbf16, #tpu.memory_space<vmem>>, %arg4: memref<8x16xf32, #tpu.memory_space<vmem>>, %arg5: memref<8x16xf32, #tpu.memory_space<vmem>>) attributes {dimension_semantics = [#tpu.dimension_semantics<parallel>, #tpu.dimension_semantics<parallel>], iteration_bounds = array<i64: 1, 1>, scalar_prefetch = 0 : i64, scratch_operands = 0 : i64, tpu.core_type = #tpu.core_type<tc>, window_params = [{transform_indices = @transform_0, window_bounds = array<i64: 8, 32>}, {transform_indices = @transform_1, window_bounds = array<i64: 32, 16>}, {transform_indices = @transform_2, window_bounds = array<i64: 8, 16>}, {transform_indices = @transform_3, window_bounds = array<i64: 8, 16>}]} {
    %c0 = arith.constant 0 : index
    %c0_0 = arith.constant 0 : index
    %0 = vector.load %arg3[%c0, %c0_0] : memref<32x16xbf16, #tpu.memory_space<vmem>>, vector<32x16xbf16>
    %1 = arith.extf %0 : vector<32x16xbf16> to vector<32x16xf32>
    %c0_1 = arith.constant 0 : index
    %c0_2 = arith.constant 0 : index
    %2 = vector.load %arg2[%c0_1, %c0_2] : memref<8x32xf32, #tpu.memory_space<vmem>>, vector<8x32xf32>
    %cst = arith.constant dense<0.000000e+00> : vector<8x16xf32>
    %3 = tpu.matmul %2, %1, %cst {dimension_numbers = #tpu.dot_dimension_numbers<[1], [0], [0], [1], [0, 0, 1, 1], [], []>} : vector<8x32xf32>, vector<32x16xf32>, vector<8x16xf32> -> vector<8x16xf32>
    %c0_3 = arith.constant 0 : index
    %c0_4 = arith.constant 0 : index
    %4 = vector.load %arg4[%c0_3, %c0_4] : memref<8x16xf32, #tpu.memory_space<vmem>>, vector<8x16xf32>
    %5 = arith.addf %3, %4 : vector<8x16xf32>
    %c0_5 = arith.constant 0 : index
    %c0_6 = arith.constant 0 : index
    %6 = vector.load %arg5[%c0_5, %c0_6] : memref<8x16xf32, #tpu.memory_space<vmem>>, vector<8x16xf32>
    tpu.vector_store %arg5[%c0_5, %c0_6], %5 {strides = array<i32>} : memref<8x16xf32, #tpu.memory_space<vmem>>, vector<8x16xf32>,
    return
  }
  func.func @transform_0(%arg0: i32, %arg1: i32) -> (i32, i32) {
    %c0_i32 = arith.constant 0 : i32
    %c0_i32_0 = arith.constant 0 : i32
    return %arg0, %c0_i32 : i32, i32
  }
  func.func @transform_1(%arg0: i32, %arg1: i32) -> (i32, i32) {
    %c0_i32 = arith.constant 0 : i32
    %c0_i32_0 = arith.constant 0 : i32
    return %c0_i32, %arg1 : i32, i32
  }
  func.func @transform_2(%arg0: i32, %arg1: i32) -> (i32, i32) {
    %c0_i32 = arith.constant 0 : i32
    return %arg0, %arg1 : i32, i32
  }
  func.func @transform_3(%arg0: i32, %arg1: i32) -> (i32, i32) {
    %c0_i32 = arith.constant 0 : i32
    return %arg0, %arg1 : i32, i32
  }
}

</mosaic_0001>

<llo_original>
// kernel: tpu_custom_call.1
$region0: #{tpu_custom_call.1}
  #allocation0 [shape = 'u32[]', space=smem, size = 0x4, offset = 0x4, fixed_abs, tag = 'smem constant byte address 0x4 - core index']
  #allocation1 [shape = 'u32[144,128]{1,0:T(1,128)}', space=vmem, size = 0x12000, scoped, tag = 'internal scratch']
  %s0 = inlined_call_operand.vmem [shape: f32[8,32], index: 0, kind: input, shape index: {}]
  %s1 = inlined_call_operand.vmem [shape: bf16[32,16], index: 1, kind: input, shape index: {}]
  %s2 = inlined_call_operand.vmem [shape: f32[8,16], index: 2, kind: input, shape index: {}]
  %s3 = inlined_call_operand.hbm [shape: f32[8,16], index: 3, kind: output, shape index: {}]
  %s4 = sld [smem:[#allocation0]]
  $region22: #{tpu_custom_call.1} parent=0
    _
  %s6 = ssub.s32 1, %s4
  %s7 = scalar_select 0, %s6, %s4
  $region1: #{tpu_custom_call.1} parent=0
    #allocation2 [shape = 'u8[4096]{0}', space=vmem, size = 0x1000, scoped, tag = 'output window, operand 0, single buffered']
    #allocation3 [shape = 's32[1]{0}', space=sflag, size = 0x4, scoped, tag = 'scoped memory for tpu_custom_call.1']
    %8 = vsyncpa [#allocation3], 0
    // Predicated region
    $region2: #{tpu_custom_call.1} parent=1 // pred_check
      _
    $region3: #{tpu_custom_call.1} parent=1 // pred_check_branch
      %10 = sbr.rel (0) target = $region5
    $region4: #{tpu_custom_call.1} parent=1 // pred_region
      _
    $region5: #{tpu_custom_call.1} parent=1 // pred_fallthru
      _
    // Predicated region
    $region6: #{tpu_custom_call.1} parent=1 // pred_check
      _
    $region7: #{tpu_custom_call.1} parent=1 // pred_check_branch
      %12 = sbr.rel (0) target = $region9
    $region8: #{tpu_custom_call.1} parent=1 // pred_region
      _
    $region9: #{tpu_custom_call.1} parent=1 // pred_fallthru
      _
    // Predicated region
    $region10: #{tpu_custom_call.1} parent=1 // pred_check
      _
    $region11: #{tpu_custom_call.1} parent=1 // pred_check_branch
      %14 = sbr.rel (0) target = $region13
    $region12: #{tpu_custom_call.1} parent=1 // pred_region
      _
    $region13: #{tpu_custom_call.1} parent=1 // pred_fallthru
      _
    %v15 = vld [vmem:[%s1] sm:$0xf]
    %v16 = vld [vmem:[%s1 + $0x4] sm:$0xf]
    %v17 = vld [vmem:[%s1 + $0x8] sm:$0xf]
    %v18 = vld [vmem:[%s1 + $0xc] sm:$0xf]
    %v19 = vunpack.c.l.bf16 %v15
    %v20 = vunpack.c.l.bf16 %v16
    %v21 = vunpack.c.l.bf16 %v17
    %v22 = vunpack.c.l.bf16 %v18
    %v23 = vld [vmem:[%s0] sm:$0xff]
    %v24 = vld [vmem:[%s2] sm:$0xff]
    %vm25 = vcmask 261120
    %v27 = vsel %vm25, %v23, 0
    %29 = vmatprep.subr.mxu0 0.0
    %30 = vmatpush1.msra.mxu0 0.0
    %31 = vmatprep.subr.mxu0 0.0
    %32 = vmatpush1.msra.mxu0 0.0
    %33 = vmatprep.subr.mxu0 0.0
    %34 = vmatpush1.msra.mxu0 0.0
    %35 = vmatprep.subr.mxu0 0.0
    %36 = vmatpush1.msra.mxu0 0.0
    %37 = vmatprep.subr.mxu0 0.0
    %38 = vmatpush1.msra.mxu0 0.0
    %39 = vmatprep.subr.mxu0 0.0
    %40 = vmatpush1.msra.mxu0 0.0
    %41 = vmatprep.subr.mxu0 0.0
    %42 = vmatpush1.msra.mxu0 0.0
    %43 = vmatprep.subr.mxu0 0.0
    %44 = vmatpush1.msra.mxu0 0.0
    %45 = vmatprep.subr.mxu0 0.0
    %46 = vmatpush1.msra.mxu0 0.0
    %47 = vmatprep.subr.mxu0 0.0
    %48 = vmatpush1.msra.mxu0 0.0
    %49 = vmatprep.subr.mxu0 0.0
    %50 = vmatpush1.msra.mxu0 0.0
    %51 = vmatprep.subr.mxu0 0.0
    %52 = vmatpush1.msra.mxu0 0.0
    %53 = vmatprep.subr.mxu0 0.0
    %54 = vmatpush1.msra.mxu0 %v22
    %55 = vmatprep.subr.mxu0 0.0
    %56 = vmatpush1.msra.mxu0 %v21
    %57 = vmatprep.subr.mxu0 0.0
    %58 = vmatpush1.msra.mxu0 %v20
    %59 = vmatprep.subr.mxu0 0.0
    %60 = vmatpush1.msra.mxu0 %v19
    %61 = vmatprep.subr.mxu0 0.0
    %62 = vmatpush2.msra.mxu0 0.0
    %63 = vmatprep.subr.mxu0 0.0
    %64 = vmatpush2.msra.mxu0 0.0
    %65 = vmatprep.subr.mxu0 0.0
    %66 = vmatpush2.msra.mxu0 0.0
    %67 = vmatprep.subr.mxu0 0.0
    %68 = vmatpush2.msra.mxu0 0.0
    %69 = vmatprep.subr.mxu0 0.0
    %70 = vmatpush2.msra.mxu0 0.0
    %71 = vmatprep.subr.mxu0 0.0
    %72 = vmatpush2.msra.mxu0 0.0
    %73 = vmatprep.subr.mxu0 0.0
    %74 = vmatpush2.msra.mxu0 0.0
    %75 = vmatprep.subr.mxu0 0.0
    %76 = vmatpush2.msra.mxu0 0.0
    %77 = vmatprep.subr.mxu0 0.0
    %78 = vmatpush2.msra.mxu0 0.0
    %79 = vmatprep.subr.mxu0 0.0
    %80 = vmatpush2.msra.mxu0 0.0
    %81 = vmatprep.subr.mxu0 0.0
    %82 = vmatpush2.msra.mxu0 0.0
    %83 = vmatprep.subr.mxu0 0.0
    %84 = vmatpush2.msra.mxu0 0.0
    %85 = vmatprep.subr.mxu0 0.0
    %86 = vmatpush2.msra.mxu0 0.0
    %87 = vmatprep.subr.mxu0 0.0
    %88 = vmatpush2.msra.mxu0 0.0
    %89 = vmatprep.subr.mxu0 0.0
    %90 = vmatpush2.msra.mxu0 0.0
    %91 = vmatprep.subr.mxu0 0.0
    %92 = vmatpush2.msra.mxu0 0.0
    %93 = vmatprep.mubr.f32.mxu0 0.0
    %94 = vmatmul.mubr.f32.gmra.mxu0 %v27
    %v95 = vpop.f32.mrf.mxu0
    %v96 = vadd.f32 %v24, %v95
    %v97 = vpop.f32.mrf.mxu0
    %98 = vdwg.mxu0
    %vm99 = vcmask 130048
    %100 = vst.msk [vmem:[#allocation2] sm:$0xff] %vm99, %v96
    // Predicated region
    $region14: #{tpu_custom_call.1} parent=1 // pred_check
      _
    $region15: #{tpu_custom_call.1} parent=1 // pred_check_branch
      %102 = sbr.rel (0) target = $region17
    $region16: #{tpu_custom_call.1} parent=1 // pred_region
      %s104 = ssub.s32 128, 128
      %105 = vsyncadd [#allocation3], %s104
      %s107 = sshll.u32 [#allocation2], 4
      %s108 = int_to_ptr.vmem [resolvable:$true] %s107
      %110 = dma.vmem_to_hbm [thread:$0]  %s108, 128, %s3, [#allocation3]
    $region17: #{tpu_custom_call.1} parent=1 // pred_fallthru
      _
    // Predicated region
    $region18: #{tpu_custom_call.1} parent=1 // pred_check
      _
    $region19: #{tpu_custom_call.1} parent=1 // pred_check_branch
      %112 = sbr.rel (0) target = $region21
    $region20: #{tpu_custom_call.1} parent=1 // pred_region
      %113 = dma.done [#allocation3], 128
    $region21: #{tpu_custom_call.1} parent=1 // pred_fallthru
      _
    %114 = vsyncpa [#allocation3], 1

</llo_original>
